<compile_context>
chip_gen: v7x
topology: tpu7x:2x2x1
jax: 0.10.0
libtpu: 0.0.40
codegen_flags: <defaults>
</compile_context>

<pallas_src>
import jax
import jax.numpy as jnp
from jax.experimental import pallas as pl
from jax.experimental.pallas import tpu as pltpu


def _round_up(x, m):
    return (x + m - 1) // m * m


def _vmem_capacity_bytes():
    """Physical VMEM capacity, conservative fallback (v7x per-TC 64 MiB)."""
    try:
        cap = getattr(pltpu.get_tpu_info(), "vmem_capacity_bytes", None)
        if cap:
            return int(cap)
    except Exception:
        pass
    return 64 << 20


def _pick_col_tile(Lpad, Kd_pad, Cout_pad, n_images, out_bytes,
                   *, target=512):
    """Pick tile_cols: a divisor of Lpad, multiple of 128, close to `target`,
    fitting a conservative VMEM budget, with >=2 tiles when n_images == 1
    (v7x has 2 TensorCores; give each a 'parallel' grid step)."""
    budget = _vmem_capacity_bytes() // 4
    cands = [c for c in range(128, Lpad + 1, 128) if Lpad % c == 0]

    def fits(c):
        work = (2 * Kd_pad * c * 2            # double-buffered bf16 input tile
                + 2 * Cout_pad * c * out_bytes  # double-buffered output tile
                + 2 * Cout_pad * Kd_pad * 4     # f32 weight
                + 2 * Cout_pad * 4)             # bias
        return work <= budget

    max_c = Lpad if n_images > 1 else max(128, Lpad // 2)
    good = [c for c in cands if c <= max_c and fits(c)]
    if not good:
        good = [c for c in cands if fits(c)] or [min(cands)]
    return min(good, key=lambda c: (abs(c - target), -c))


def _conv_mm_kernel(p_ref, w_ref, b_ref, o_ref):
    """One grid step = one (image, spatial-column-tile) pair.

    p_ref: (1, Kd_pad, tile_cols) bf16  im2col slab tile (spatial on lanes).
    w_ref: (Cout_pad, Kd_pad)     f32   folded merged weight (cast to bf16
                                        only at the MXU; tiny, VMEM resident).
    b_ref: (Cout_pad, 1)          f32   bias.
    o_ref: (1, Cout_pad, tile_cols)     output tile, already NCHW-flat.
    """
    p = p_ref[0]                                        # (Kd_pad, tile_cols)
    w = w_ref[...].astype(jnp.bfloat16)                 # (Cout_pad, Kd_pad)
    acc = jnp.dot(w, p, preferred_element_type=jnp.float32)
    # NOTE: padded Cout rows / padded spatial columns are sliced off by the
    # wrapper, so any future nonzero-at-zero epilogue there stays harmless.
    o_ref[0] = (acc + b_ref[...]).astype(o_ref.dtype)   # single lane-dense store


def transconv2d_pallas(x_nchw, base, kern, bias, *, stride=1, padding=0,
                       trantype="inter", col_tile=None):
    """Fused TransConv2d forward.  x is NCHW, weights OIHW (PyTorch layout)."""
    N, Cin, H, W = x_nchw.shape

    # ---- fold the 1x1 and KxK convolutions into one merged KxK weight (f32).
    if trantype == "inter":
        Cmid, Cin_b = base.shape[0], base.shape[1]
        Cout, KH, KW = kern.shape[0], kern.shape[2], kern.shape[3]
        assert Cin == Cin_b and kern.shape[1] == Cmid
        # merged[o,i,h,w] = sum_m base[m,i] * kern[o,m,h,w]
        w_oihw = jnp.einsum("mi,omhw->oihw",
                            base[:, :, 0, 0].astype(jnp.float32),
                            kern.astype(jnp.float32))
    elif trantype == "exter":
        Cmid, Cin_k = kern.shape[0], kern.shape[1]
        Cout, KH, KW = base.shape[0], kern.shape[2], kern.shape[3]
        assert Cin == Cin_k and base.shape[1] == Cmid
        # merged[o,i,h,w] = sum_m base[o,m] * kern[m,i,h,w]
        w_oihw = jnp.einsum("om,mihw->oihw",
                            base[:, :, 0, 0].astype(jnp.float32),
                            kern.astype(jnp.float32))
    else:
        raise ValueError(trantype)

    sh = sw = int(stride)
    ph = pw = int(padding)
    out_dtype = x_nchw.dtype
    out_bytes = jnp.dtype(out_dtype).itemsize

    Ho = (H + 2 * ph - KH) // sh + 1
    Wo = (W + 2 * pw - KW) // sw + 1
    L = Ho * Wo
    Kd = Cin * KH * KW

    # ---- wrapper im2col slab: (N, Kd, L), channel-major / tap-minor, bf16.
    # Ordering matches w_oihw.reshape(Cout, Cin*KH*KW):  idx = c*KH*KW + kh*KW + kw.
    xp = x_nchw
    if ph or pw:
        xp = jnp.pad(xp, ((0, 0), (0, 0), (ph, ph), (pw, pw)))
    cols = []
    for kh in range(KH):
        for kw in range(KW):
            cols.append(jax.lax.slice(
                xp, (0, 0, kh, kw),
                (N, Cin, kh + (Ho - 1) * sh + 1, kw + (Wo - 1) * sw + 1),
                (1, 1, sh, sw)))                        # (N, Cin, Ho, Wo)
    patches = jnp.stack(cols, axis=2)                   # (N, Cin, KH*KW, Ho, Wo)
    patches = patches.reshape(N, Kd, L).astype(jnp.bfloat16)   # bf16 DMA

    # ---- pad: Cout -> mult of 8 (sublane), spatial -> mult of 128 (lane),
    # contraction depth -> mult of 8.
    Cout_pad = _round_up(Cout, 8)
    Kd_pad = _round_up(Kd, 8)
    Lpad = _round_up(L, 128)
    if Kd_pad > Kd or Lpad > L:
        patches = jnp.pad(patches, ((0, 0), (0, Kd_pad - Kd), (0, Lpad - L)))
    w2 = jnp.pad(w_oihw.reshape(Cout, Kd),
                 ((0, Cout_pad - Cout), (0, Kd_pad - Kd)))          # f32
    b2 = jnp.pad(bias.astype(jnp.float32),
                 (0, Cout_pad - Cout)).reshape(Cout_pad, 1)

    tile_cols = col_tile if col_tile is not None else _pick_col_tile(
        Lpad, Kd_pad, Cout_pad, N, out_bytes)
    assert tile_cols % 128 == 0 and Lpad % tile_cols == 0, (Lpad, tile_cols)
    nT = Lpad // tile_cols

    per_step = (2 * Kd_pad * tile_cols * 2
                + 2 * Cout_pad * tile_cols * out_bytes
                + 2 * Cout_pad * Kd_pad * 4
                + 2 * Cout_pad * 4)
    vmem_limit = int(min(max(4 * per_step, 16 << 20), _vmem_capacity_bytes()))

    out = pl.pallas_call(
        _conv_mm_kernel,
        out_shape=jax.ShapeDtypeStruct((N, Cout_pad, Lpad), out_dtype),
        grid_spec=pltpu.PrefetchScalarGridSpec(
            num_scalar_prefetch=0,
            grid=(N, nT),
            in_specs=[
                pl.BlockSpec((1, Kd_pad, tile_cols), lambda n, t: (n, 0, t)),
                pl.BlockSpec((Cout_pad, Kd_pad), lambda n, t: (0, 0)),
                pl.BlockSpec((Cout_pad, 1), lambda n, t: (0, 0)),
            ],
            out_specs=pl.BlockSpec((1, Cout_pad, tile_cols),
                                   lambda n, t: (n, 0, t)),
        ),
        compiler_params=pltpu.CompilerParams(
            dimension_semantics=("parallel", "parallel"),
            vmem_limit_bytes=vmem_limit),
    )(patches, w2, b2)

    # Output is already NCHW-flat: just drop padding and fold spatial dims.
    return out[:, :Cout, :L].reshape(N, Cout, Ho, Wo)


class TransConv2dPallas:
    """Pallas equivalent of TransConv2d with codekern=codebase=False."""

    def __init__(self, base, kern, bias, stride, padding, trantype="inter"):
        self.base = jnp.asarray(base)
        self.kern = jnp.asarray(kern)
        self.bias = jnp.asarray(bias)
        self.stride = stride
        self.padding = padding
        self.trantype = trantype

    def __call__(self, x_nchw):
        return transconv2d_pallas(x_nchw, self.base, self.kern, self.bias,
                                  stride=self.stride, padding=self.padding,
                                  trantype=self.trantype)


def _reference(x, base, kern, bias, stride, padding, trantype):
    """Plain-JAX reference matching the PyTorch two-conv semantics."""
    dn = ("NCHW", "OIHW", "NCHW")
    pad = [(padding, padding), (padding, padding)]
    if trantype == "inter":
        y = jax.lax.conv_general_dilated(x, base, (1, 1), "VALID",
                                         dimension_numbers=dn)
        y = jax.lax.conv_general_dilated(y, kern, (stride, stride), pad,
                                         dimension_numbers=dn)
    else:
        y = jax.lax.conv_general_dilated(x, kern, (stride, stride), pad,
                                         dimension_numbers=dn)
        y = jax.lax.conv_general_dilated(y, base, (1, 1), "VALID",
                                         dimension_numbers=dn)
    return y + bias[None, :, None, None]


if __name__ == "__main__":
    key = jax.random.PRNGKey(0)
    k1, k2, k3, k4, k5, k6 = jax.random.split(key, 6)

    # Shapes consistent with the module:
    #   x    : (N=2, Cin=4, H=16, W=16)
    #   base : (Cmid=8, Cin=4, 1, 1)      inter conv1 / exter conv2 weight
    #   kern : (Cout=6, Cmid=8, K=3, 3)   inter conv2 / (Cmid,Cin,K,K) exter
    #   bias : (Cout=6,)
    N, Cin, H, W = 2, 4, 16, 16
    Cmid, Cout, K = 8, 6, 3
    stride, padding = 1, 1

    x = jax.random.normal(k1, (N, Cin, H, W), jnp.float32)

    # bf16 MXU inputs with f32 accumulation -> slightly relaxed tolerance
    # against the f32 reference.
    ATOL = RTOL = 5e-3

    # --- trantype='inter' ---
    base = jax.random.normal(k2, (Cmid, Cin, 1, 1), jnp.float32) * 0.1
    kern = jax.random.normal(k3, (Cout, Cmid, K, K), jnp.float32) * 0.1
    bias = jax.random.normal(k4, (Cout,), jnp.float32) * 0.1
    model = TransConv2dPallas(base, kern, bias, stride, padding, "inter")
    out = jax.block_until_ready(model(x))
    ref = _reference(x, base, kern, bias, stride, padding, "inter")
    assert out.shape == ref.shape, (out.shape, ref.shape)
    assert jnp.allclose(out, ref, atol=ATOL, rtol=RTOL), float(
        jnp.max(jnp.abs(out - ref)))

    # --- trantype='exter' ---
    kern_e = jax.random.normal(k5, (Cmid, Cin, K, K), jnp.float32) * 0.1
    base_e = jax.random.normal(k6, (Cout, Cmid, 1, 1), jnp.float32) * 0.1
    model_e = TransConv2dPallas(base_e, kern_e, bias, stride, padding, "exter")
    out_e = jax.block_until_ready(model_e(x))
    ref_e = _reference(x, base_e, kern_e, bias, stride, padding, "exter")
    assert out_e.shape == ref_e.shape, (out_e.shape, ref_e.shape)
    assert jnp.allclose(out_e, ref_e, atol=ATOL, rtol=RTOL), float(
        jnp.max(jnp.abs(out_e - ref_e)))

    print("KERNEL_OK")
</pallas_src>

<mosaic_0001>
module attributes {stable_mosaic.version = 11 : i64} {
  func.func @_conv_mm_kernel(%arg0: i32, %arg1: i32, %arg2: memref<1x40x256xbf16, #tpu.memory_space<vmem>>, %arg3: memref<8x40xf32, #tpu.memory_space<vmem>>, %arg4: memref<8x1xf32, #tpu.memory_space<vmem>>, %arg5: memref<1x8x256xf32, #tpu.memory_space<vmem>>) attributes {dimension_semantics = [#tpu.dimension_semantics<parallel>, #tpu.dimension_semantics<parallel>], iteration_bounds = array<i64: 2, 1>, scalar_prefetch = 0 : i64, scratch_operands = 0 : i64, tpu.core_type = #tpu.core_type<tc>, window_params = [{transform_indices = @transform_0, window_bounds = array<i64: 1, 40, 256>}, {pipeline_mode = #tpu.pipeline_mode<synchronous>, transform_indices = @transform_1, window_bounds = array<i64: 8, 40>}, {pipeline_mode = #tpu.pipeline_mode<synchronous>, transform_indices = @transform_2, window_bounds = array<i64: 8, 1>}, {transform_indices = @transform_3, window_bounds = array<i64: 1, 8, 256>}]} {
    %c0 = arith.constant 0 : index
    %c0_0 = arith.constant 0 : index
    %c0_1 = arith.constant 0 : index
    %0 = vector.load %arg2[%c0, %c0_0, %c0_1] : memref<1x40x256xbf16, #tpu.memory_space<vmem>>, vector<1x40x256xbf16>
    %1 = vector.shape_cast %0 : vector<1x40x256xbf16> to vector<40x256xbf16>
    %c0_2 = arith.constant 0 : index
    %c0_3 = arith.constant 0 : index
    %2 = vector.load %arg3[%c0_2, %c0_3] : memref<8x40xf32, #tpu.memory_space<vmem>>, vector<8x40xf32>
    %3 = arith.truncf %2 : vector<8x40xf32> to vector<8x40xbf16>
    %cst = arith.constant dense<0.000000e+00> : vector<8x256xf32>
    %4 = tpu.matmul %3, %1, %cst {dimension_numbers = #tpu.dot_dimension_numbers<[1], [0], [0], [1], [0, 0, 1, 1], [], []>} : vector<8x40xbf16>, vector<40x256xbf16>, vector<8x256xf32> -> vector<8x256xf32>
    %c0_4 = arith.constant 0 : index
    %c0_5 = arith.constant 0 : index
    %5 = vector.load %arg4[%c0_4, %c0_5] : memref<8x1xf32, #tpu.memory_space<vmem>>, vector<8x1xf32>
    %6 = vector.broadcast %5 : vector<8x1xf32> to vector<8x256xf32>
    %7 = arith.addf %4, %6 : vector<8x256xf32>
    %c0_6 = arith.constant 0 : index
    %c0_7 = arith.constant 0 : index
    %c0_8 = arith.constant 0 : index
    %8 = vector.load %arg5[%c0_6, %c0_7, %c0_8] : memref<1x8x256xf32, #tpu.memory_space<vmem>>, vector<1x8x256xf32>
    %9 = vector.shape_cast %8 : vector<1x8x256xf32> to vector<8x256xf32>
    %10 = vector.shape_cast %7 : vector<8x256xf32> to vector<1x8x256xf32>
    tpu.vector_store %arg5[%c0_6, %c0_7, %c0_8], %10 {strides = array<i32>} : memref<1x8x256xf32, #tpu.memory_space<vmem>>, vector<1x8x256xf32>,
    return
  }
  func.func @transform_0(%arg0: i32, %arg1: i32) -> (i32, i32, i32) {
    %c0_i32 = arith.constant 0 : i32
    %c0_i32_0 = arith.constant 0 : i32
    return %arg0, %c0_i32, %arg1 : i32, i32, i32
  }
  func.func @transform_1(%arg0: i32, %arg1: i32) -> (i32, i32) {
    %c0_i32 = arith.constant 0 : i32
    %c0_i32_0 = arith.constant 0 : i32
    %c0_i32_1 = arith.constant 0 : i32
    return %c0_i32, %c0_i32_0 : i32, i32
  }
  func.func @transform_2(%arg0: i32, %arg1: i32) -> (i32, i32) {
    %c0_i32 = arith.constant 0 : i32
    %c0_i32_0 = arith.constant 0 : i32
    %c0_i32_1 = arith.constant 0 : i32
    return %c0_i32, %c0_i32_0 : i32, i32
  }
  func.func @transform_3(%arg0: i32, %arg1: i32) -> (i32, i32, i32) {
    %c0_i32 = arith.constant 0 : i32
    %c0_i32_0 = arith.constant 0 : i32
    return %arg0, %c0_i32, %arg1 : i32, i32, i32
  }
}

</mosaic_0001>

<llo_original>
// kernel: tpu_custom_call.1
$region0: #{tpu_custom_call.1}
  #allocation0 [shape = 'u32[]', space=smem, size = 0x4, offset = 0x4, fixed_abs, tag = 'smem constant byte address 0x4 - core index']
  #allocation1 [shape = 'u32[144,128]{1,0:T(1,128)}', space=vmem, size = 0x12000, scoped, tag = 'internal scratch']
  %s0 = inlined_call_operand.hbm [shape: bf16[2,40,256], index: 0, kind: input, shape index: {}]
  %s1 = inlined_call_operand.vmem [shape: f32[8,40], index: 1, kind: input, shape index: {}]
  %s2 = inlined_call_operand.vmem [shape: f32[8,1], index: 2, kind: input, shape index: {}]
  %s3 = inlined_call_operand.hbm [shape: f32[2,8,256], index: 3, kind: output, shape index: {}]
  %s4 = sld [smem:[#allocation0]]
  $region49: #{tpu_custom_call.1} parent=0
    _
  %s6 = ssub.s32 1, %s4
  %s7 = scalar_select 0, %s6, %s4
  $region1: #{tpu_custom_call.1} parent=0
    #allocation2 [shape = 'u8[40960]{0}', space=vmem, size = 0xa000, scoped, tag = 'input window, operand 0']
    #allocation3 [shape = 's32[2]{0}', space=sflag, size = 0x8, scoped, tag = 'scoped memory for tpu_custom_call.1']
    #allocation4 [shape = 's32[2]{0}', space=sflag, size = 0x8, scoped, tag = 'scoped memory for tpu_custom_call.1']
    #allocation5 [shape = 'u8[16384]{0}', space=vmem, size = 0x4000, scoped, tag = 'output window, operand 0']
    %8 = vsyncpa [#allocation3], 0
    %s9 = scalar_lea.sflag [#allocation3], 1
    %10 = vsyncpa %s9, 0
    %11 = vsyncpa [#allocation4], 0
    %s12 = scalar_lea.sflag [#allocation4], 1
    %13 = vsyncpa %s12, 0
    loop: start=0, step=1, limit=4
    $region2: #{tpu_custom_call.1} parent=1 // loop_pre_header
      _
    $region3: #{tpu_custom_call.1} parent=1 // loop_header
      %s15 = sphi 0, %s19
      %p16 = scmp.ge.s32.totalorder %s15, 4
      %s22 = sphi 0, %s34
      %s23 = sphi 0, %s30
      %s24 = sphi 0, %s22
      %s25 = sphi 0, %s23
      %s26 = sphi 0, %s24
      %s27 = sphi 0, %s25
      %s39 = sphi 0, %s41
      %s42 = sphi 0, %s39
      %s43 = sphi 0, %s42
      %s59 = sphi 0, %s43
      %s63 = sphi 0, %s63
      %s65 = sphi 0, %s63
      %s66 = sphi 0, %s65
      %s80 = sphi 0, %s66
      %s84 = sphi 0, %s84
      %s86 = sphi 0, %s84
      %s87 = sphi 0, %s86
      %s101 = sphi 0, %s87
      %s109 = sphi 0, %s111
      %s112 = sphi 0, %s109
      %s113 = sphi 0, %s112
      %s129 = sphi 0, %s113
    $region4: #{tpu_custom_call.1} parent=1 // loop_header_branch
      %18 = sbr.rel (%p16) target = $region8
    $region5: #{tpu_custom_call.1} parent=1 // loop_body
      %s20 = ssub.s32 %s15, 1
      %s21 = ssub.s32 %s15, 2
      %s28 = sadd.s32 1, %s23
      %p29 = scmp.ge.s32.totalorder %s28, 1
      %s30 = scalar_select %p29, 0, %s28
      %s31 = sadd.s32 1, %s22
      %s32 = scalar_select %p29, %s31, %s22
      %p33 = scmp.ge.s32.totalorder %s32, 2
      %s34 = scalar_select %p33, 0, %s32
      %s35 = ssub.s32 %s22, %s34
      %s36 = ssub.s32 %s23, %s30
      %s37 = sor.u32 %s35, %s36
      %p38 = scmp.eq.s32.totalorder %s37, 0
      %s40 = sadd.s32 %s39, 1
      %s41 = scalar_select %p38, %s39, %s40
      %p44 = pneg %p38
      %p45 = scmp.eq.s32.totalorder %s15, 1
      %p46 = por %p44, %p45
      %p47 = scmp.ne.s32.totalorder %s39, %s42
      %p48 = scmp.eq.s32.totalorder %s15, 0
      %p49 = por %p47, %p48
      %p50 = scmp.ne.s32.totalorder %s39, %s42
      %p51 = scmp.eq.s32.totalorder %s20, 1
      %p52 = por %p50, %p51
      %p53 = scmp.ne.s32.totalorder %s42, %s43
      %p54 = scmp.eq.s32.totalorder %s20, 0
      %p55 = por %p53, %p54
      %p56 = scmp.ne.s32.totalorder %s42, %s43
      %p57 = scmp.eq.s32.totalorder %s21, 1
      %p58 = por %p56, %p57
      %p60 = scmp.ne.s32.totalorder %s43, %s59
      %p61 = scmp.eq.s32.totalorder %s21, 0
      %p62 = por %p60, %p61
      %s64 = sadd.s32 %s63, 1
      %p67 = scmp.eq.s32.totalorder %s15, 1
      %p68 = scmp.ne.s32.totalorder %s63, %s65
      %p69 = scmp.eq.s32.totalorder %s15, 0
      %p70 = por %p68, %p69
      %p71 = scmp.ne.s32.totalorder %s63, %s65
      %p72 = scmp.eq.s32.totalorder %s20, 1
      %p73 = por %p71, %p72
      %p74 = scmp.ne.s32.totalorder %s65, %s66
      %p75 = scmp.eq.s32.totalorder %s20, 0
      %p76 = por %p74, %p75
      %p77 = scmp.ne.s32.totalorder %s65, %s66
      %p78 = scmp.eq.s32.totalorder %s21, 1
      %p79 = por %p77, %p78
      %p81 = scmp.ne.s32.totalorder %s66, %s80
      %p82 = scmp.eq.s32.totalorder %s21, 0
      %p83 = por %p81, %p82
      %s85 = sadd.s32 %s84, 1
      %p88 = scmp.eq.s32.totalorder %s15, 1
      %p89 = scmp.ne.s32.totalorder %s84, %s86
      %p90 = scmp.eq.s32.totalorder %s15, 0
      %p91 = por %p89, %p90
      %p92 = scmp.ne.s32.totalorder %s84, %s86
      %p93 = scmp.eq.s32.totalorder %s20, 1
      %p94 = por %p92, %p93
      %p95 = scmp.ne.s32.totalorder %s86, %s87
      %p96 = scmp.eq.s32.totalorder %s20, 0
      %p97 = por %p95, %p96
      %p98 = scmp.ne.s32.totalorder %s86, %s87
      %p99 = scmp.eq.s32.totalorder %s21, 1
      %p100 = por %p98, %p99
      %p102 = scmp.ne.s32.totalorder %s87, %s101
      %p103 = scmp.eq.s32.totalorder %s21, 0
      %p104 = por %p102, %p103
      %s105 = ssub.s32 %s22, %s34
      %s106 = ssub.s32 %s23, %s30
      %s107 = sor.u32 %s105, %s106
      %p108 = scmp.eq.s32.totalorder %s107, 0
      %s110 = sadd.s32 %s109, 1
      %s111 = scalar_select %p108, %s109, %s110
      %p114 = pneg %p108
      %p115 = scmp.eq.s32.totalorder %s15, 1
      %p116 = por %p114, %p115
      %p117 = scmp.ne.s32.totalorder %s109, %s112
      %p118 = scmp.eq.s32.totalorder %s15, 0
      %p119 = por %p117, %p118
      %p120 = scmp.ne.s32.totalorder %s109, %s112
      %p121 = scmp.eq.s32.totalorder %s20, 1
      %p122 = por %p120, %p121
      %p123 = scmp.ne.s32.totalorder %s112, %s113
      %p124 = scmp.eq.s32.totalorder %s20, 0
      %p125 = por %p123, %p124
      %p126 = scmp.ne.s32.totalorder %s112, %s113
      %p127 = scmp.eq.s32.totalorder %s21, 1
      %p128 = por %p126, %p127
      %p130 = scmp.ne.s32.totalorder %s113, %s129
      %p131 = scmp.eq.s32.totalorder %s21, 0
      %p132 = por %p130, %p131
      %p133 = scmp.le.s32.totalorder 1, %s15
      %p134 = scmp.lt.s32.totalorder %s15, 3
      %p135 = pnand %p133, %p134
      %p136 = pneg %p135
      // Predicated region
      $region9: #{tpu_custom_call.1} parent=5 // pred_check
        _
      $region10: #{tpu_custom_call.1} parent=5 // pred_check_branch
        %138 = sbr.rel (%p135) target = $region12
      $region11: #{tpu_custom_call.1} parent=5 // pred_region
        %s139 = ssub.s32 %s15, 1
        // Predicated region
        $region13: #{tpu_custom_call.1} parent=11 // pred_check
          %p140 = pneg %p76
        $region14: #{tpu_custom_call.1} parent=11 // pred_check_branch
          %142 = sbr.rel (%p140) target = $region16
        $region15: #{tpu_custom_call.1} parent=11 // pred_region
          _
        $region16: #{tpu_custom_call.1} parent=11 // pred_fallthru
          _
        // Predicated region
        $region17: #{tpu_custom_call.1} parent=11 // pred_check
          %p143 = pneg %p97
        $region18: #{tpu_custom_call.1} parent=11 // pred_check_branch
          %145 = sbr.rel (%p143) target = $region20
        $region19: #{tpu_custom_call.1} parent=11 // pred_region
          _
        $region20: #{tpu_custom_call.1} parent=11 // pred_fallthru
          _
      $region12: #{tpu_custom_call.1} parent=5 // pred_fallthru
        _
      %p146 = scmp.lt.s32.totalorder %s15, 2
      // Predicated region
      $region21: #{tpu_custom_call.1} parent=5 // pred_check
        %p147 = pneg %p146
      $region22: #{tpu_custom_call.1} parent=5 // pred_check_branch
        %149 = sbr.rel (%p147) target = $region24
      $region23: #{tpu_custom_call.1} parent=5 // pred_region
        // Predicated region
        $region25: #{tpu_custom_call.1} parent=23 // pred_check
          %p150 = pneg %p49
        $region26: #{tpu_custom_call.1} parent=23 // pred_check_branch
          %152 = sbr.rel (%p150) target = $region28
        $region27: #{tpu_custom_call.1} parent=23 // pred_region
          %s153 = sand.u32 %s39, 1
          %s154 = scalar_lea.sflag [#allocation3], %s153
          %s155 = sand.u32 %s39, 1
          %s156 = smul.addr %s155, 40
          %s157 = scalar_lea.vmem [#allocation2], %s156
          %s158 = smul.u32 2, %s23
          %s160 = ssub.s32 640, 640
          %161 = vsyncadd %s154, %s160
          %s162 = smul.addr %s22, 10
          %s163 = sadd.s32 %s158, %s162
          %s164 = smul.addr %s163, 64
          %s165 = scalar_lea.hbm %s0, %s164
          %s166 = sshll.u32 %s157, 4
          %s167 = int_to_ptr.vmem [resolvable:$true] %s166
          %172 = dma.hbm_to_vmem [thread:$0]  %s165, 640, %s167, %s154, 128, 128, 8
        $region28: #{tpu_custom_call.1} parent=23 // pred_fallthru
          _
      $region24: #{tpu_custom_call.1} parent=5 // pred_fallthru
        _
      %p173 = scmp.le.s32.totalorder 1, %s15
      %p174 = scmp.lt.s32.totalorder %s15, 3
      %p175 = pnand %p173, %p174
      %p176 = pneg %p175
      // Predicated region
      $region29: #{tpu_custom_call.1} parent=5 // pred_check
        _
      $region30: #{tpu_custom_call.1} parent=5 // pred_check_branch
        %178 = sbr.rel (%p175) target = $region32
      $region31: #{tpu_custom_call.1} parent=5 // pred_region
        %s179 = ssub.s32 %s15, 1
        %s180 = sand.u32 %s42, 1
        %s181 = scalar_lea.sflag [#allocation3], %s180
        %s182 = sand.u32 %s42, 1
        %s183 = smul.addr %s182, 40
        %s184 = scalar_lea.vmem [#allocation2], %s183
        // Predicated region
        $region33: #{tpu_custom_call.1} parent=31 // pred_check
          %p185 = pneg %p55
        $region34: #{tpu_custom_call.1} parent=31 // pred_check_branch
          %187 = sbr.rel (%p185) target = $region36
        $region35: #{tpu_custom_call.1} parent=31 // pred_region
          %188 = dma.done %s181, 640
        $region36: #{tpu_custom_call.1} parent=31 // pred_fallthru
          _
        %s189 = sand.u32 %s42, 1
        %s190 = scalar_lea.sflag [#allocation3], %s189
        %s191 = sand.u32 %s42, 1
        %s192 = smul.addr %s191, 40
        %s193 = scalar_lea.vmem [#allocation2], %s192
        %p194 = pneg %p55
        %p195 = pneg %p52
        %p196 = pneg %p76
        %p197 = pneg %p73
        %p198 = pneg %p97
        %p199 = pneg %p94
        %p200 = pneg %p125
        %p201 = pneg %p122
        %s202 = sand.u32 %s112, 1
        %s203 = scalar_lea.sflag [#allocation4], %s202
        %s204 = sand.u32 %s112, 1
        %s205 = smul.addr %s204, 16
        %s206 = scalar_lea.vmem [#allocation5], %s205
        %s207 = smul.u32 2, %s25
        %s208 = smul.u32 2, %s25
        %v210 = vld [vmem:[%s184] sm:$0xff]
        %v211 = vld [vmem:[%s184 + $0x8] sm:$0xff]
        %v212 = vld [vmem:[%s184 + $0x10] sm:$0xff]
        %v213 = vld [vmem:[%s184 + $0x18] sm:$0xff]
        %v214 = vld [vmem:[%s184 + $0x20] sm:$0xff]
        %v215 = vld [vmem:[%s1] sm:$0xff]
        %v216 = vpack.c.bf16 %v215, %v215
        %v217 = vld [vmem:[%s2] sm:$0xff]
        %219 = vset.pattern.permute.xlu0 0
        %220 = vperm.xlu0 %219, %v217
        %v221 = vpop.permute.xlu0 %220
        %v228 = vunpack.c.l.b16 %v210
        %v229 = vunpack.c.h.b16 %v210
        %v230 = vunpack.c.l.b16 %v211
        %v231 = vunpack.c.h.b16 %v211
        %v232 = vunpack.c.l.b16 %v212
        %v233 = vunpack.c.h.b16 %v212
        %v234 = vunpack.c.l.b16 %v213
        %v235 = vunpack.c.h.b16 %v213
        %v236 = vunpack.c.l.b16 %v214
        %v237 = vunpack.c.h.b16 %v214
        %v238 = vpack.c.b16 %v230, %v228
        %v239 = vpack.c.b16 %v231, %v229
        %v240 = vpack.c.b16 %v234, %v232
        %v241 = vpack.c.b16 %v235, %v233
        %v242 = vpack.c.b16 %v236, %v236
        %v243 = vpack.c.b16 %v237, %v237
        %vm248 = vcmask 326656
        %v250 = vsel %vm248, %v216, 0
        %vm252 = vcmask 1043456
        %v254 = vsel %vm252, %v242, 0
        %v257 = vsel %vm252, %v243, 0
        %259 = vmatprep.subr.bf16.mxu0 %v239
        %260 = vmatpush1.bf16.msra.mxu0 %v238
        %261 = vmatprep.subr.bf16.mxu0 %v241
        %262 = vmatpush1.bf16.msra.mxu0 %v240
        %263 = vmatprep.subr.bf16.mxu0 %v257
        %264 = vmatpush1.bf16.msra.mxu0 %v254
        %265 = vmatprep.subr.bf16.mxu0 0
        %266 = vmatpush1.bf16.msra.mxu0 0
        %267 = vmatprep.subr.bf16.mxu0 0
        %268 = vmatpush1.bf16.msra.mxu0 0
        %269 = vmatprep.subr.bf16.mxu0 0
        %270 = vmatpush1.bf16.msra.mxu0 0
        %271 = vmatprep.subr.bf16.mxu0 0
        %272 = vmatpush1.bf16.msra.mxu0 0
        %273 = vmatprep.subr.bf16.mxu0 0
        %274 = vmatpush1.bf16.msra.mxu0 0
        %275 = vmatprep.subr.bf16.mxu0 0
        %276 = vmatpush1.bf16.msra.mxu0 0
        %277 = vmatprep.subr.bf16.mxu0 0
        %278 = vmatpush1.bf16.msra.mxu0 0
        %279 = vmatprep.subr.bf16.mxu0 0
        %280 = vmatpush1.bf16.msra.mxu0 0
        %281 = vmatprep.subr.bf16.mxu0 0
        %282 = vmatpush1.bf16.msra.mxu0 0
        %283 = vmatprep.subr.bf16.mxu0 0
        %284 = vmatpush1.bf16.msra.mxu0 0
        %285 = vmatprep.subr.bf16.mxu0 0
        %286 = vmatpush1.bf16.msra.mxu0 0
        %287 = vmatprep.subr.bf16.mxu0 0
        %288 = vmatpush1.bf16.msra.mxu0 0
        %289 = vmatprep.subr.bf16.mxu0 0
        %290 = vmatpush1.bf16.msra.mxu0 0
        %291 = vmatprep.mubr.bf16.mxu0 0
        %292 = vmatmul.mubr.bf16.gmra.mrb[0].mxu0 %v250
        %v293 = vpop.f32.mrb[0].mxu0
        %v294 = vadd.f32 %v221, %v293
        %v295 = vpop.f32.mrb[0].mxu0
        %v296 = vadd.f32 %v221, %v295
        %v297 = vpop.f32.mrb[0].mxu0
        %v298 = vpop.f32.mrb[0].mxu0
        %299 = vdwg.mxu0
        %300 = vst [vmem:[%s206] sm:$0xff] %v294
        %301 = vst [vmem:[%s206 + $0x8] sm:$0xff] %v296
        %s302 = sand.u32 %s112, 1
        %s303 = scalar_lea.sflag [#allocation4], %s302
        %s304 = sand.u32 %s112, 1
        %s305 = smul.addr %s304, 16
        %s306 = scalar_lea.vmem [#allocation5], %s305
        // Predicated region
        $region37: #{tpu_custom_call.1} parent=31 // pred_check
          %p307 = pneg %p122
        $region38: #{tpu_custom_call.1} parent=31 // pred_check_branch
          %309 = sbr.rel (%p307) target = $region40
        $region39: #{tpu_custom_call.1} parent=31 // pred_region
          %s310 = smul.u32 2, %s25
          %s312 = ssub.s32 256, 256
          %313 = vsyncadd %s303, %s312
          %s314 = smul.addr %s24, 2
          %s315 = sadd.s32 %s310, %s314
          %s316 = smul.addr %s315, 128
          %s317 = scalar_lea.hbm %s3, %s316
          %s319 = sshll.u32 %s306, 4
          %s320 = int_to_ptr.vmem [resolvable:$true] %s319
          %322 = dma.vmem_to_hbm [thread:$0]  %s320, 256, %s317, %s303
        $region40: #{tpu_custom_call.1} parent=31 // pred_fallthru
          _
      $region32: #{tpu_custom_call.1} parent=5 // pred_fallthru
        _
      %p323 = scmp.le.s32.totalorder 2, %s15
      // Predicated region
      $region41: #{tpu_custom_call.1} parent=5 // pred_check
        %p324 = pneg %p323
      $region42: #{tpu_custom_call.1} parent=5 // pred_check_branch
        %326 = sbr.rel (%p324) target = $region44
      $region43: #{tpu_custom_call.1} parent=5 // pred_region
        %s327 = ssub.s32 %s15, 2
        // Predicated region
        $region45: #{tpu_custom_call.1} parent=43 // pred_check
          %p328 = pneg %p128
        $region46: #{tpu_custom_call.1} parent=43 // pred_check_branch
          %330 = sbr.rel (%p328) target = $region48
        $region47: #{tpu_custom_call.1} parent=43 // pred_region
          %s331 = sand.u32 %s113, 1
          %s332 = scalar_lea.sflag [#allocation4], %s331
          %s333 = sand.u32 %s113, 1
          %s334 = smul.addr %s333, 16
          %s335 = scalar_lea.vmem [#allocation5], %s334
          %336 = dma.done %s332, 256
        $region48: #{tpu_custom_call.1} parent=43 // pred_fallthru
          _
      $region44: #{tpu_custom_call.1} parent=5 // pred_fallthru
        _
    $region6: #{tpu_custom_call.1} parent=1 // loop_footer
      %s19 = sadd.s32 1, %s15
    $region7: #{tpu_custom_call.1} parent=1 // loop_footer_branch
      %14 = sbr.rel target = $region3
    $region8: #{tpu_custom_call.1} parent=1 // loop_exit
      _
    %337 = vsyncpa [#allocation3], 1
    %s338 = scalar_lea.sflag [#allocation3], 1
    %339 = vsyncpa %s338, 1
    %340 = vsyncpa [#allocation4], 1
    %s341 = scalar_lea.sflag [#allocation4], 1
    %342 = vsyncpa %s341, 1

</llo_original>
